<compile_context>
chip_gen: v7x
topology: tpu7x:2x2x1
jax: 0.10.0
libtpu: 0.0.40
codegen_flags: <defaults>
</compile_context>

<pallas_src>
import functools

import jax
import jax.numpy as jnp
from jax import lax
from jax.experimental import pallas as pl
from jax.experimental.pallas import tpu as pltpu


def _round_up(n, m):
    return ((n + m - 1) // m) * m


def _cdiv(a, b):
    return -(-a // b)


def _vmem_capacity_bytes():
    """Physical VMEM per TensorCore; conservative fallback if query fails
    (also covers AOT / cross-compilation where the query may mis-target)."""
    try:
        info = pltpu.get_tpu_info()
        cap = getattr(info, "vmem_capacity_bytes", None)
        if cap:
            return int(cap)
    except Exception:
        pass
    return 64 << 20  # v7x-sized (smallest current generation) — safe everywhere


def _rmsnorm_kernel(x_ref, scale_ref, o_ref, *, eps, inv_d):
    # All reduction math in f32 (matches the PyTorch reference exactly).
    x = x_ref[...].astype(jnp.float32)                        # (tm, D)
    var = jnp.sum(x * x, axis=-1, keepdims=True) * inv_d      # (tm, 1)
    norm = x * lax.rsqrt(var + eps)                           # (tm, D)
    o_ref[...] = (norm * scale_ref[...]).astype(o_ref.dtype)  # scale already f32


def rmsnorm(x, scale, eps=1e-6):
    """x: array of shape (..., emb_dim); scale: (emb_dim,)."""
    orig_shape = x.shape
    orig_dtype = x.dtype
    emb_dim = orig_shape[-1]
    x2d = x.reshape(-1, emb_dim)
    rows = x2d.shape[0]

    dtype_bytes = jnp.dtype(orig_dtype).itemsize
    # Sublane pack: f32 -> 8, bf16 -> 16, int8/fp8 -> 32.
    sub = max(8, 32 // dtype_bytes)

    # --- VMEM-budget-driven row tile -------------------------------------
    # Per grid step: double-buffered input block + double-buffered output
    # block (2 * 2 * tm * D * dtype_bytes) plus ~3 f32 temporaries of the
    # block (x, x*x, norm) at tm * D * 12 bytes.  Keep that under a third of
    # physical VMEM so it also fits v7x (64 MiB), and cap tm at 512 rows.
    cap = _vmem_capacity_bytes()
    budget = cap // 3
    bytes_per_row = emb_dim * (4 * dtype_bytes + 12)
    tm = budget // max(1, bytes_per_row)
    tm = max(sub, min(512, (tm // sub) * sub))
    tm = min(tm, _round_up(rows, sub))

    # Ragged-tail grid: no wrapper padding; Pallas masks the tail block.
    steps = _cdiv(rows, tm)
    # Keep an even step count (when > 1) so v7x's two TensorCores split the
    # "parallel" rows axis evenly.
    if steps > 1 and steps % 2 == 1:
        steps += 1
        tm = max(sub, _round_up(_cdiv(rows, steps), sub))
        steps = _cdiv(rows, tm)
    grid = (steps,)

    # f32-resident scale row (full emb_dim block, constant index_map).
    scale2d = scale.astype(jnp.float32).reshape(1, emb_dim)

    kernel = functools.partial(
        _rmsnorm_kernel, eps=float(eps), inv_d=1.0 / float(emb_dim)
    )

    footprint = tm * emb_dim * (4 * dtype_bytes + 12) + emb_dim * 4
    vmem_limit = int(min(cap - (4 << 20), max(32 << 20, footprint + (8 << 20))))

    cost = pl.CostEstimate(
        flops=4 * rows * emb_dim,
        transcendentals=rows,
        bytes_accessed=2 * rows * emb_dim * dtype_bytes + emb_dim * 4,
    )

    out = pl.pallas_call(
        kernel,
        out_shape=jax.ShapeDtypeStruct((rows, emb_dim), orig_dtype),
        grid_spec=pltpu.PrefetchScalarGridSpec(
            num_scalar_prefetch=0,
            grid=grid,
            in_specs=[
                pl.BlockSpec((tm, emb_dim), lambda i: (i, 0)),
                pl.BlockSpec((1, emb_dim), lambda i: (0, 0)),  # resident scale
            ],
            out_specs=pl.BlockSpec((tm, emb_dim), lambda i: (i, 0)),
        ),
        compiler_params=pltpu.CompilerParams(
            dimension_semantics=("parallel",),
            vmem_limit_bytes=vmem_limit,
        ),
        cost_estimate=cost,
    )(x2d, scale2d)

    return out.reshape(orig_shape)


def rmsnorm_ref(x, scale, eps=1e-6):
    input_dtype = x.dtype
    xf = x.astype(jnp.float32)
    variance = jnp.mean(xf * xf, axis=-1, keepdims=True)
    norm_x = xf * lax.rsqrt(variance + eps)
    norm_x = norm_x * scale.astype(jnp.float32)
    return norm_x.astype(input_dtype)


if __name__ == "__main__":
    key = jax.random.PRNGKey(0)

    # --- f32 case (emb_dim=32, full-dim lane block, no padding) ----------
    batch, seq, emb_dim = 2, 8, 32
    kx, ks, kx2 = jax.random.split(key, 3)
    x = jax.random.normal(kx, (batch, seq, emb_dim), dtype=jnp.float32)
    scale = jnp.ones((emb_dim,), dtype=jnp.float32) + 0.1 * jax.random.normal(
        ks, (emb_dim,), dtype=jnp.float32
    )

    out = jax.block_until_ready(rmsnorm(x, scale, eps=1e-6))
    expected = rmsnorm_ref(x, scale, eps=1e-6)
    assert out.shape == x.shape and out.dtype == x.dtype
    assert jnp.allclose(out, expected, atol=1e-5, rtol=1e-5), (
        "Pallas RMSNorm (f32) mismatch vs reference"
    )

    # --- bf16 case with odd row count (exercises the ragged tail block) --
    xb = jax.random.normal(kx2, (3, 5, emb_dim), dtype=jnp.float32).astype(
        jnp.bfloat16
    )
    out_b = jax.block_until_ready(rmsnorm(xb, scale, eps=1e-6))
    exp_b = rmsnorm_ref(xb, scale, eps=1e-6)
    assert out_b.shape == xb.shape and out_b.dtype == xb.dtype
    assert jnp.allclose(
        out_b.astype(jnp.float32), exp_b.astype(jnp.float32), atol=1e-2, rtol=1e-2
    ), "Pallas RMSNorm (bf16) mismatch vs reference"

    print("KERNEL_OK")
</pallas_src>

<mosaic_0001>
module attributes {stable_mosaic.version = 11 : i64} {
  func.func @_rmsnorm_kernel(%arg0: i32, %arg1: memref<16x32xf32, #tpu.memory_space<vmem>>, %arg2: memref<1x32xf32, #tpu.memory_space<vmem>>, %arg3: memref<16x32xf32, #tpu.memory_space<vmem>>) attributes {dimension_semantics = [#tpu.dimension_semantics<parallel>], iteration_bounds = array<i64: 1>, scalar_prefetch = 0 : i64, scratch_operands = 0 : i64, tpu.core_type = #tpu.core_type<tc>, window_params = [{transform_indices = @transform_0, window_bounds = array<i64: 16, 32>}, {pipeline_mode = #tpu.pipeline_mode<synchronous>, transform_indices = @transform_1, window_bounds = array<i64: 1, 32>}, {transform_indices = @transform_2, window_bounds = array<i64: 16, 32>}]} {
    %c0 = arith.constant 0 : index
    %c0_0 = arith.constant 0 : index
    %0 = vector.load %arg1[%c0, %c0_0] : memref<16x32xf32, #tpu.memory_space<vmem>>, vector<16x32xf32>
    %1 = arith.mulf %0, %0 : vector<16x32xf32>
    %cst = arith.constant dense<0.000000e+00> : vector<16xf32>
    %2 = vector.multi_reduction <add>, %1, %cst [1] : vector<16x32xf32> to vector<16xf32>
    %3 = vector.shape_cast %2 : vector<16xf32> to vector<16x1xf32>
    %cst_1 = arith.constant 3.125000e-02 : f32
    %4 = vector.broadcast %cst_1 : f32 to vector<16x1xf32>
    %5 = arith.mulf %3, %4 : vector<16x1xf32>
    %cst_2 = arith.constant 9.99999997E-7 : f32
    %6 = vector.broadcast %cst_2 : f32 to vector<16x1xf32>
    %7 = arith.addf %5, %6 : vector<16x1xf32>
    %8 = math.rsqrt %7 : vector<16x1xf32>
    %9 = vector.broadcast %8 : vector<16x1xf32> to vector<16x32xf32>
    %10 = arith.mulf %0, %9 : vector<16x32xf32>
    %c0_3 = arith.constant 0 : index
    %c0_4 = arith.constant 0 : index
    %11 = vector.load %arg2[%c0_3, %c0_4] : memref<1x32xf32, #tpu.memory_space<vmem>>, vector<1x32xf32>
    %12 = vector.broadcast %11 : vector<1x32xf32> to vector<16x32xf32>
    %13 = arith.mulf %10, %12 : vector<16x32xf32>
    %c0_5 = arith.constant 0 : index
    %c0_6 = arith.constant 0 : index
    %14 = vector.load %arg3[%c0_5, %c0_6] : memref<16x32xf32, #tpu.memory_space<vmem>>, vector<16x32xf32>
    tpu.vector_store %arg3[%c0_5, %c0_6], %13 {strides = array<i32>} : memref<16x32xf32, #tpu.memory_space<vmem>>, vector<16x32xf32>,
    return
  }
  func.func @transform_0(%arg0: i32) -> (i32, i32) {
    %c0_i32 = arith.constant 0 : i32
    %c0_i32_0 = arith.constant 0 : i32
    return %arg0, %c0_i32 : i32, i32
  }
  func.func @transform_1(%arg0: i32) -> (i32, i32) {
    %c0_i32 = arith.constant 0 : i32
    %c0_i32_0 = arith.constant 0 : i32
    %c0_i32_1 = arith.constant 0 : i32
    return %c0_i32, %c0_i32_0 : i32, i32
  }
  func.func @transform_2(%arg0: i32) -> (i32, i32) {
    %c0_i32 = arith.constant 0 : i32
    %c0_i32_0 = arith.constant 0 : i32
    return %arg0, %c0_i32 : i32, i32
  }
}

</mosaic_0001>

<llo_original>
// kernel: tpu_custom_call.1
$region0: #{tpu_custom_call.1}
  #allocation0 [shape = 'u32[]', space=smem, size = 0x4, offset = 0x4, fixed_abs, tag = 'smem constant byte address 0x4 - core index']
  #allocation1 [shape = 'u32[144,128]{1,0:T(1,128)}', space=vmem, size = 0x12000, scoped, tag = 'internal scratch']
  %s0 = inlined_call_operand.hbm [shape: f32[16,32], index: 0, kind: input, shape index: {}]
  %s1 = inlined_call_operand.vmem [shape: f32[1,32], index: 1, kind: input, shape index: {}]
  %s2 = inlined_call_operand.hbm [shape: f32[16,32], index: 2, kind: output, shape index: {}]
  %s3 = sld [smem:[#allocation0]]
  $region22: #{tpu_custom_call.1} parent=0
    _
  %s5 = ssub.s32 1, %s3
  %s6 = scalar_select 0, %s5, %s3
  $region1: #{tpu_custom_call.1} parent=0
    #allocation2 [shape = 'u8[8192]{0}', space=vmem, size = 0x2000, scoped, tag = 'input window, operand 0, single buffered']
    #allocation3 [shape = 's32[1]{0}', space=sflag, size = 0x4, scoped, tag = 'scoped memory for tpu_custom_call.1']
    #allocation4 [shape = 's32[1]{0}', space=sflag, size = 0x4, scoped, tag = 'scoped memory for tpu_custom_call.1']
    #allocation5 [shape = 'u8[8192]{0}', space=vmem, size = 0x2000, scoped, tag = 'output window, operand 0, single buffered']
    %7 = vsyncpa [#allocation3], 0
    %8 = vsyncpa [#allocation4], 0
    // Predicated region
    $region2: #{tpu_custom_call.1} parent=1 // pred_check
      _
    $region3: #{tpu_custom_call.1} parent=1 // pred_check_branch
      %10 = sbr.rel (0) target = $region5
    $region4: #{tpu_custom_call.1} parent=1 // pred_region
      %s12 = ssub.s32 256, 256
      %13 = vsyncadd [#allocation3], %s12
      %s14 = sshll.u32 [#allocation2], 4
      %s15 = int_to_ptr.vmem [resolvable:$true] %s14
      %20 = dma.hbm_to_vmem [thread:$0]  %s0, 256, %s15, [#allocation3], 128, 128, 8
    $region5: #{tpu_custom_call.1} parent=1 // pred_fallthru
      _
    // Predicated region
    $region6: #{tpu_custom_call.1} parent=1 // pred_check
      _
    $region7: #{tpu_custom_call.1} parent=1 // pred_check_branch
      %22 = sbr.rel (0) target = $region9
    $region8: #{tpu_custom_call.1} parent=1 // pred_region
      _
    $region9: #{tpu_custom_call.1} parent=1 // pred_fallthru
      _
    // Predicated region
    $region10: #{tpu_custom_call.1} parent=1 // pred_check
      _
    $region11: #{tpu_custom_call.1} parent=1 // pred_check_branch
      %24 = sbr.rel (0) target = $region13
    $region12: #{tpu_custom_call.1} parent=1 // pred_region
      %25 = dma.done [#allocation3], 256
    $region13: #{tpu_custom_call.1} parent=1 // pred_fallthru
      _
    %v26 = vld [vmem:[#allocation2] sm:$0xff]
    %v27 = vld [vmem:[#allocation2 + $0x8] sm:$0xff]
    %v28 = vmul.f32 %v26, %v26
    %v29 = vmul.f32 %v27, %v27
    %vm30 = vcmask 261120
    %v31 = vsel %vm30, %v28, 0.0
    %32 = vadd.xlane.f32.xlu0 %v31
    %v33 = vpop.xlane.xlu0 %32
    %v34 = vsel %vm30, %v29, 0.0
    %35 = vadd.xlane.f32.xlu0 %v34
    %v36 = vpop.xlane.xlu0 %35
    %v37 = vmul.f32 %v33, 0.03125
    %v38 = vmul.f32 %v36, 0.03125
    %v39 = vadd.f32 %v37, 1e-06
    %v40 = vadd.f32 %v38, 1e-06
    %v41 = vrsqrt.pop %v39
    %v42 = vrsqrt.pop %v40
    %v43 = vmul.f32 %v26, %v41
    %v44 = vmul.f32 %v27, %v42
    %v45 = vld [vmem:[%s1] sm:$0x1]
    %v47 = vlaneseq
    %v48 = vshrl.u32 %v47, 7
    %v49 = vsub.s32 0, %v48
    %v50 = vrot.slane %v45, %v49
    %v52 = vmul.f32 %v43, %v50
    %v53 = vmul.f32 %v44, %v50
    %54 = vst.msk [vmem:[#allocation5] sm:$0xff] %vm30, %v52
    %55 = vst.msk [vmem:[#allocation5 + $0x8] sm:$0xff] %vm30, %v53
    // Predicated region
    $region14: #{tpu_custom_call.1} parent=1 // pred_check
      _
    $region15: #{tpu_custom_call.1} parent=1 // pred_check_branch
      %57 = sbr.rel (0) target = $region17
    $region16: #{tpu_custom_call.1} parent=1 // pred_region
      %s59 = ssub.s32 256, 256
      %60 = vsyncadd [#allocation4], %s59
      %s61 = sshll.u32 [#allocation5], 4
      %s62 = int_to_ptr.vmem [resolvable:$true] %s61
      %67 = dma.vmem_to_hbm [thread:$0]  %s62, 256, %s2, [#allocation4], 128, 128, 8
    $region17: #{tpu_custom_call.1} parent=1 // pred_fallthru
      _
    // Predicated region
    $region18: #{tpu_custom_call.1} parent=1 // pred_check
      _
    $region19: #{tpu_custom_call.1} parent=1 // pred_check_branch
      %69 = sbr.rel (0) target = $region21
    $region20: #{tpu_custom_call.1} parent=1 // pred_region
      %70 = dma.done [#allocation4], 256
    $region21: #{tpu_custom_call.1} parent=1 // pred_fallthru
      _
    %71 = vsyncpa [#allocation3], 1
    %72 = vsyncpa [#allocation4], 1

</llo_original>
